<compile_context>
chip_gen: v5e
topology: v5e:2x2
jax: 0.10.0
libtpu: 0.0.40
codegen_flags: <defaults>
</compile_context>

<pallas_src>
import functools

import jax
import jax.numpy as jnp
from jax.experimental import pallas as pl
from jax.experimental.pallas import tpu as pltpu


def _cdiv(a, b):
    return -(-a // b)


def _round_up(v, m):
    return _cdiv(v, m) * m


def _padded_nbytes(shape, dtype):
    """VMEM footprint of one array after (sublane, lane) tiling/padding."""
    dt = jnp.dtype(dtype)
    sub = 8 * max(1, 4 // dt.itemsize)          # 8 rows f32, 16 rows bf16
    if len(shape) == 0:
        lead, r, c = 1, 1, 1
    elif len(shape) == 1:
        lead, r, c = 1, 1, int(shape[0])
    else:
        lead = 1
        for s in shape[:-2]:
            lead *= int(s)
        r, c = int(shape[-2]), int(shape[-1])
    return lead * _round_up(r, sub) * _round_up(max(c, 1), 128) * dt.itemsize


@functools.lru_cache(maxsize=1)
def _vmem_capacity_bytes():
    """Per-core VMEM capacity; conservative 64 MiB if the query is unavailable."""
    try:
        cap = getattr(pltpu.get_tpu_info(), "vmem_capacity_bytes", None)
        if cap:
            return int(cap)
    except Exception:  # capability probe only -- never a compile fallback
        pass
    return 64 << 20


def _vmem_estimate(weight_args, block_n, d, dims, fused, mxu_dtype):
    """Peak VMEM: resident weights + double-buffered I/O tiles + live hidden state."""
    weights = sum(_padded_nbytes(a.shape, a.dtype) for a in weight_args)
    io = (2 * _padded_nbytes((block_n, d), mxu_dtype)        # double-buffered x tiles
          + 2 * _padded_nbytes((block_n, d), jnp.float32))   # double-buffered out tiles
    unit = _padded_nbytes((block_n, d), jnp.float32)         # one (block_n, d) f32 tile
    m1 = dims[1]
    pairs = [dims[i] + dims[i + 1] for i in range(1, len(dims) - 1)]
    live_units = max([m1 + 1] + pairs)                       # sigmoid overwrites in place
    live = live_units * unit
    if fused:  # fused path also keeps a narrow copy of sigmoid(h) for the MXU
        live += max(dims[1:]) * _padded_nbytes((block_n, d), mxu_dtype)
    return weights + io + live


# --------------------------------------------------------------------------
# Kernels
# --------------------------------------------------------------------------
def _dagma_kernel_tiled(dims, x_ref, w1_ref, b1_ref, *rest):
    """d % 128 == 0: one wide fc1 MXU matmul + lane-aligned per-hidden-unit tiles.

    w1_ref:(d, m1*d) with column k*d + j, b1_ref:(1, m1*d);
    per layer: lc_w:(m_in*m_out, d) with row k*m_out + l, lc_b:(m_out, d).
    """
    out_ref = rest[-1]
    lc_refs = rest[:-1]
    d, m1 = dims[0], dims[1]
    num_lc = len(dims) - 2

    x = x_ref[...]
    # fc1: single wide MXU matmul, f32 accumulate.
    h_wide = jnp.dot(x, w1_ref[...], preferred_element_type=jnp.float32) + b1_ref[...]
    # Lane-aligned slices (d is a multiple of 128): h[k][n, j] = fc1(x)[n, j*m1 + k].
    h = [h_wide[:, k * d:(k + 1) * d] for k in range(m1)]

    for li in range(num_lc):
        w_ref = lc_refs[2 * li]
        b_ref = lc_refs[2 * li + 1]
        m_in, m_out = dims[li + 1], dims[li + 2]
        h = [jax.nn.sigmoid(hk) for hk in h]       # overwrite in place: live set = m_in tiles
        new_h = []
        for l in range(m_out):
            acc = h[0] * w_ref[l:l + 1, :]         # (block_n, d) * (1, d) VPU multiply-add
            for k in range(1, m_in):
                r = k * m_out + l
                acc = acc + h[k] * w_ref[r:r + 1, :]
            new_h.append(acc + b_ref[l:l + 1, :])
        h = new_h

    # dims[-1] == 1 -> a single (block_n, d) tile remains (torch squeeze(dim=2)).
    out_ref[...] = h[0].astype(out_ref.dtype)


def _dagma_kernel_fused(num_lc, x_ref, w1_ref, b1_ref, *rest):
    """d % 128 != 0 (small d): keep the hidden state as ONE fused lane-dense
    (block_n, d*m) tile; every LocallyConnected layer is a block-diagonal MXU
    matmul, so no sub-128-lane slices or masked stores ever occur."""
    out_ref = rest[-1]
    lc_refs = rest[:-1]

    x = x_ref[...]
    h = jnp.dot(x, w1_ref[...], preferred_element_type=jnp.float32) + b1_ref[...]
    for li in range(num_lc):
        w_ref = lc_refs[2 * li]                    # (d*m_in, d*m_out) block-diagonal
        b_ref = lc_refs[2 * li + 1]                # (1, d*m_out)
        s = jax.nn.sigmoid(h).astype(w_ref.dtype)
        h = jnp.dot(s, w_ref[...], preferred_element_type=jnp.float32) + b_ref[...]
    # Final layer has m_out == 1 -> h is already (block_n, d).
    out_ref[...] = h.astype(out_ref.dtype)


# --------------------------------------------------------------------------
# Host-side weight relayout (fuses into the surrounding jit)
# --------------------------------------------------------------------------
def _relayout_tiled(fc1_weight, fc1_bias, lc_weights, lc_biases, d, m1, mxu_dtype):
    # fc1 (d*m1, d), row j*m1+k  ->  (d, m1*d): W[i, k*d + j] = fc1_weight[j*m1+k, i].
    w1 = jnp.transpose(fc1_weight.reshape(d, m1, d), (2, 1, 0)).reshape(d, m1 * d)
    b1 = fc1_bias.reshape(d, m1).T.reshape(1, m1 * d)
    args = [w1.astype(mxu_dtype), b1.astype(jnp.float32)]
    for w, b in zip(lc_weights, lc_biases):
        _, m_in, m_out = w.shape
        # (d, m_in, m_out) -> flat 2-D (m_in*m_out, d), row k*m_out + l: no 8x sublane padding.
        args.append(jnp.transpose(w, (1, 2, 0)).reshape(m_in * m_out, d).astype(jnp.float32))
        args.append(jnp.transpose(b, (1, 0)).astype(jnp.float32))           # (m_out, d)
    return args


def _relayout_fused(fc1_weight, fc1_bias, lc_weights, lc_biases, d, m1, mxu_dtype):
    # Fused column layout c = j*m + k matches torch's view(n, d, m) directly.
    w1 = jnp.transpose(fc1_weight).astype(mxu_dtype)                        # (d, d*m1)
    b1 = fc1_bias.reshape(1, d * m1).astype(jnp.float32)
    args = [w1, b1]
    eye = jnp.eye(d, dtype=jnp.float32)
    for w, b in zip(lc_weights, lc_biases):
        _, m_in, m_out = w.shape
        # Block-diagonal (d*m_in, d*m_out): B[j*m_in + k, j*m_out + l] = w[j, k, l].
        blk = (w[:, :, None, :] * eye[:, None, :, None]).reshape(d * m_in, d * m_out)
        args.append(blk.astype(mxu_dtype))
        args.append(b.reshape(1, d * m_out).astype(jnp.float32))
    return args


def _select_block_n(n, requested, row_align, d, dims, fused, mxu_dtype, weight_args, vmem_hi):
    if requested is not None:
        bn = _round_up(max(int(requested), row_align), row_align)
    else:
        target = 1024 if jnp.dtype(mxu_dtype).itemsize == 2 else 512
        # Keep >= ~8 grid blocks when n allows: shards the parallel batch axis
        # across both v7x TensorCores and gives the pipeline steps to overlap.
        per8 = _round_up(max(_cdiv(n, 8), row_align), row_align)
        bn = min(target, per8)
    bn = min(bn, _round_up(max(n, row_align), row_align))
    # Shrink only if the VMEM estimate does not fit the per-generation budget.
    while bn > row_align and _vmem_estimate(weight_args, bn, d, dims, fused, mxu_dtype) > vmem_hi:
        bn = _round_up(bn // 2, row_align)
    return bn


# --------------------------------------------------------------------------
# Public forward
# --------------------------------------------------------------------------
@functools.partial(jax.jit, static_argnames=("block_n", "mxu_dtype"))
def dagma_mlp_forward(x, fc1_weight, fc1_bias, lc_weights, lc_biases, *,
                      block_n=None, mxu_dtype=jnp.float32):
    """Pallas implementation of DagmaMLP.forward.

    x:          (n, d) float32
    fc1_weight: (d*m1, d)   (PyTorch nn.Linear convention: (out, in))
    fc1_bias:   (d*m1,)
    lc_weights: list of (d, m_in, m_out)
    lc_biases:  list of (d, m_out)
    returns:    (n, d) float32
    """
    n, d = x.shape
    m1 = fc1_weight.shape[0] // d
    dims = tuple([d, m1] + [int(w.shape[2]) for w in lc_weights])
    assert len(dims) >= 2 and dims[-1] == 1, "DagmaMLP requires dims[-1] == 1"
    num_lc = len(dims) - 2
    mxu_dtype = jnp.dtype(mxu_dtype)
    row_align = 16 if mxu_dtype.itemsize == 2 else 8

    # Static layout choice (see module docstring).
    fused = (d % 128 != 0)
    if fused:
        weight_args = _relayout_fused(fc1_weight, fc1_bias, lc_weights, lc_biases,
                                      d, m1, mxu_dtype)
        kernel = functools.partial(_dagma_kernel_fused, num_lc)
    else:
        weight_args = _relayout_tiled(fc1_weight, fc1_bias, lc_weights, lc_biases,
                                      d, m1, mxu_dtype)
        kernel = functools.partial(_dagma_kernel_tiled, dims)

    capacity = _vmem_capacity_bytes()
    vmem_hi = max(32 << 20, capacity - (16 << 20))            # capacity minus headroom
    bn = _select_block_n(n, block_n, row_align, d, dims, fused, mxu_dtype,
                         weight_args, vmem_hi)
    est = _vmem_estimate(weight_args, bn, d, dims, fused, mxu_dtype)
    vmem_limit = int(min(vmem_hi, max(32 << 20, int(1.5 * est) + (8 << 20))))

    # Static resident-vs-pipelined decision (no try/except, no double compile).
    weights_bytes = sum(_padded_nbytes(a.shape, a.dtype) for a in weight_args)
    if weights_bytes <= vmem_hi // 2:
        # Whole-array, single-buffered VMEM residents: no per-step weight DMA.
        w_specs = [pl.BlockSpec(memory_space=pltpu.MemorySpace.VMEM)
                   for _ in weight_args]
    else:
        # Very large models: full-shape pipeline blocks with a constant index map.
        w_specs = [pl.BlockSpec(a.shape, lambda *_i, _nd=a.ndim: (0,) * _nd)
                   for a in weight_args]

    # Ragged batch: no jnp.pad / out[:n] copy -- Pallas handles the partial last
    # block (rows are fully independent in this kernel, so padding rows are inert).
    grid = (_cdiv(n, bn),)
    x_spec = pl.BlockSpec((bn, d), lambda i: (i, 0))
    out_spec = pl.BlockSpec((bn, d), lambda i: (i, 0))

    flops = 2 * n * d * d * m1
    for i in range(1, len(dims) - 1):
        flops += 2 * n * d * dims[i] * dims[i + 1]
    transcendentals = n * d * sum(dims[1:-1])
    bytes_accessed = (n * d * (mxu_dtype.itemsize + 4)
                      + sum(int(a.size) * a.dtype.itemsize for a in weight_args))

    return pl.pallas_call(
        kernel,
        out_shape=jax.ShapeDtypeStruct((n, d), jnp.float32),
        grid=grid,
        in_specs=[x_spec] + w_specs,
        out_specs=out_spec,
        compiler_params=pltpu.CompilerParams(
            dimension_semantics=("parallel",),
            vmem_limit_bytes=vmem_limit,
        ),
        cost_estimate=pl.CostEstimate(
            flops=int(flops),
            transcendentals=int(transcendentals),
            bytes_accessed=int(bytes_accessed),
        ),
    )(x.astype(mxu_dtype), *weight_args)


# --------------------------------------------------------------------------
# Pure-JAX reference + demo
# --------------------------------------------------------------------------
def dagma_mlp_reference(x, fc1_weight, fc1_bias, lc_weights, lc_biases):
    """Pure-JAX reference mirroring the PyTorch forward exactly (HIGHEST precision)."""
    n, d = x.shape
    m1 = fc1_weight.shape[0] // d
    hp = jax.lax.Precision.HIGHEST
    y = jnp.dot(x, fc1_weight.T, precision=hp) + fc1_bias     # (n, d*m1)
    y = y.reshape(n, d, m1)                                   # torch .view(-1, d, m1)
    for w, b in zip(lc_weights, lc_biases):
        y = jax.nn.sigmoid(y)
        # LocallyConnected: out[n, j, :] = y[n, j, :] @ w[j] + b[j]
        y = jnp.einsum("njk,jkl->njl", y, w, precision=hp) + b[None]
    return y[..., 0]                                          # squeeze(dim=2)


def _demo_case(key, n, d, m1, m2):
    ks = jax.random.split(key, 7)
    x = jax.random.normal(ks[0], (n, d), dtype=jnp.float32)
    # NOTE: the module zero-inits fc1; small random values exercise the hot path.
    fc1_w = 0.1 * jax.random.normal(ks[1], (d * m1, d), dtype=jnp.float32)
    fc1_b = 0.1 * jax.random.normal(ks[2], (d * m1,), dtype=jnp.float32)
    lc_w = [0.1 * jax.random.normal(ks[3], (d, m1, m2), dtype=jnp.float32),
            0.1 * jax.random.normal(ks[4], (d, m2, 1), dtype=jnp.float32)]
    lc_b = [0.1 * jax.random.normal(ks[5], (d, m2), dtype=jnp.float32),
            0.1 * jax.random.normal(ks[6], (d, 1), dtype=jnp.float32)]
    return x, fc1_w, fc1_b, lc_w, lc_b


if __name__ == "__main__":
    key = jax.random.PRNGKey(0)
    k_small, k_big = jax.random.split(key)

    # --- case 1: small d (fused lane-dense path), ragged batch (100 not a tile multiple) ---
    x, fc1_w, fc1_b, lc_w, lc_b = _demo_case(k_small, n=100, d=16, m1=8, m2=6)
    ref = dagma_mlp_reference(x, fc1_w, fc1_b, lc_w, lc_b)

    out = jax.block_until_ready(dagma_mlp_forward(x, fc1_w, fc1_b, lc_w, lc_b))
    assert out.shape == (100, 16)
    assert jnp.allclose(out, ref, atol=1e-5, rtol=1e-4), "small-d f32 mismatch vs. reference"

    out_bf16 = jax.block_until_ready(
        dagma_mlp_forward(x, fc1_w, fc1_b, lc_w, lc_b, mxu_dtype=jnp.bfloat16))
    assert out_bf16.shape == (100, 16)
    assert jnp.allclose(out_bf16, ref, atol=3e-2), "small-d bf16 mismatch vs. reference"

    # --- case 2: d = 128 (lane-aligned tiled path, single wide fc1 matmul), ragged batch ---
    x, fc1_w, fc1_b, lc_w, lc_b = _demo_case(k_big, n=600, d=128, m1=4, m2=3)
    ref = dagma_mlp_reference(x, fc1_w, fc1_b, lc_w, lc_b)

    out = jax.block_until_ready(dagma_mlp_forward(x, fc1_w, fc1_b, lc_w, lc_b))
    assert out.shape == (600, 128)
    assert jnp.allclose(out, ref, atol=1e-4, rtol=1e-3), "aligned-d f32 mismatch vs. reference"

    print("KERNEL_OK")
</pallas_src>

<mosaic_0001>
module attributes {stable_mosaic.version = 11 : i64} {
  func.func @_dagma_kernel_fused(%arg0: i32, %arg1: memref<16x16xf32, #tpu.memory_space<vmem>>, %arg2: memref<16x128xf32, #tpu.memory_space<vmem>>, %arg3: memref<1x128xf32, #tpu.memory_space<vmem>>, %arg4: memref<128x96xf32, #tpu.memory_space<vmem>>, %arg5: memref<1x96xf32, #tpu.memory_space<vmem>>, %arg6: memref<96x16xf32, #tpu.memory_space<vmem>>, %arg7: memref<1x16xf32, #tpu.memory_space<vmem>>, %arg8: memref<16x16xf32, #tpu.memory_space<vmem>>) attributes {dimension_semantics = [#tpu.dimension_semantics<parallel>], iteration_bounds = array<i64: 7>, scalar_prefetch = 0 : i64, scratch_operands = 0 : i64, tpu.core_type = #tpu.core_type<tc>, window_params = [{transform_indices = @transform_0, window_bounds = array<i64: 16, 16>}, {pipeline_mode = #tpu.pipeline_mode<synchronous>, transform_indices = @transform_1, window_bounds = array<i64: 16, 128>}, {pipeline_mode = #tpu.pipeline_mode<synchronous>, transform_indices = @transform_2, window_bounds = array<i64: 1, 128>}, {pipeline_mode = #tpu.pipeline_mode<synchronous>, transform_indices = @transform_3, window_bounds = array<i64: 128, 96>}, {pipeline_mode = #tpu.pipeline_mode<synchronous>, transform_indices = @transform_4, window_bounds = array<i64: 1, 96>}, {pipeline_mode = #tpu.pipeline_mode<synchronous>, transform_indices = @transform_5, window_bounds = array<i64: 96, 16>}, {pipeline_mode = #tpu.pipeline_mode<synchronous>, transform_indices = @transform_6, window_bounds = array<i64: 1, 16>}, {transform_indices = @transform_7, window_bounds = array<i64: 16, 16>}]} {
    %c0 = arith.constant 0 : index
    %c0_0 = arith.constant 0 : index
    %0 = vector.load %arg1[%c0, %c0_0] : memref<16x16xf32, #tpu.memory_space<vmem>>, vector<16x16xf32>
    %c0_1 = arith.constant 0 : index
    %c0_2 = arith.constant 0 : index
    %1 = vector.load %arg2[%c0_1, %c0_2] : memref<16x128xf32, #tpu.memory_space<vmem>>, vector<16x128xf32>
    %cst = arith.constant dense<0.000000e+00> : vector<16x128xf32>
    %2 = tpu.matmul %0, %1, %cst {dimension_numbers = #tpu.dot_dimension_numbers<[1], [0], [0], [1], [0, 0, 1, 1], [], []>} : vector<16x16xf32>, vector<16x128xf32>, vector<16x128xf32> -> vector<16x128xf32>
    %c0_3 = arith.constant 0 : index
    %c0_4 = arith.constant 0 : index
    %3 = vector.load %arg3[%c0_3, %c0_4] : memref<1x128xf32, #tpu.memory_space<vmem>>, vector<1x128xf32>
    %4 = vector.broadcast %3 : vector<1x128xf32> to vector<16x128xf32>
    %5 = arith.addf %2, %4 : vector<16x128xf32>
    %6 = arith.negf %5 : vector<16x128xf32>
    %7 = math.exp %6 : vector<16x128xf32>
    %cst_5 = arith.constant 1.000000e+00 : f32
    %8 = vector.broadcast %cst_5 : f32 to vector<16x128xf32>
    %9 = arith.addf %8, %7 : vector<16x128xf32>
    %10 = arith.divf %8, %9 : vector<16x128xf32>
    %c0_6 = arith.constant 0 : index
    %c0_7 = arith.constant 0 : index
    %11 = vector.load %arg4[%c0_6, %c0_7] : memref<128x96xf32, #tpu.memory_space<vmem>>, vector<128x96xf32>
    %cst_8 = arith.constant dense<0.000000e+00> : vector<16x96xf32>
    %12 = tpu.matmul %10, %11, %cst_8 {dimension_numbers = #tpu.dot_dimension_numbers<[1], [0], [0], [1], [0, 0, 1, 1], [], []>} : vector<16x128xf32>, vector<128x96xf32>, vector<16x96xf32> -> vector<16x96xf32>
    %c0_9 = arith.constant 0 : index
    %c0_10 = arith.constant 0 : index
    %13 = vector.load %arg5[%c0_9, %c0_10] : memref<1x96xf32, #tpu.memory_space<vmem>>, vector<1x96xf32>
    %14 = vector.broadcast %13 : vector<1x96xf32> to vector<16x96xf32>
    %15 = arith.addf %12, %14 : vector<16x96xf32>
    %16 = arith.negf %15 : vector<16x96xf32>
    %17 = math.exp %16 : vector<16x96xf32>
    %cst_11 = arith.constant 1.000000e+00 : f32
    %18 = vector.broadcast %cst_11 : f32 to vector<16x96xf32>
    %19 = arith.addf %18, %17 : vector<16x96xf32>
    %20 = arith.divf %18, %19 : vector<16x96xf32>
    %c0_12 = arith.constant 0 : index
    %c0_13 = arith.constant 0 : index
    %21 = vector.load %arg6[%c0_12, %c0_13] : memref<96x16xf32, #tpu.memory_space<vmem>>, vector<96x16xf32>
    %cst_14 = arith.constant dense<0.000000e+00> : vector<16x16xf32>
    %22 = tpu.matmul %20, %21, %cst_14 {dimension_numbers = #tpu.dot_dimension_numbers<[1], [0], [0], [1], [0, 0, 1, 1], [], []>} : vector<16x96xf32>, vector<96x16xf32>, vector<16x16xf32> -> vector<16x16xf32>
    %c0_15 = arith.constant 0 : index
    %c0_16 = arith.constant 0 : index
    %23 = vector.load %arg7[%c0_15, %c0_16] : memref<1x16xf32, #tpu.memory_space<vmem>>, vector<1x16xf32>
    %24 = vector.broadcast %23 : vector<1x16xf32> to vector<16x16xf32>
    %25 = arith.addf %22, %24 : vector<16x16xf32>
    %c0_17 = arith.constant 0 : index
    %c0_18 = arith.constant 0 : index
    %26 = vector.load %arg8[%c0_17, %c0_18] : memref<16x16xf32, #tpu.memory_space<vmem>>, vector<16x16xf32>
    tpu.vector_store %arg8[%c0_17, %c0_18], %25 {strides = array<i32>} : memref<16x16xf32, #tpu.memory_space<vmem>>, vector<16x16xf32>,
    return
  }
  func.func @transform_0(%arg0: i32) -> (i32, i32) {
    %c0_i32 = arith.constant 0 : i32
    %c0_i32_0 = arith.constant 0 : i32
    return %arg0, %c0_i32 : i32, i32
  }
  func.func @transform_1(%arg0: i32) -> (i32, i32) {
    %c0_i32 = arith.constant 0 : i32
    %c0_i32_0 = arith.constant 0 : i32
    %c0_i32_1 = arith.constant 0 : i32
    return %c0_i32, %c0_i32_0 : i32, i32
  }
  func.func @transform_2(%arg0: i32) -> (i32, i32) {
    %c0_i32 = arith.constant 0 : i32
    %c0_i32_0 = arith.constant 0 : i32
    %c0_i32_1 = arith.constant 0 : i32
    return %c0_i32, %c0_i32_0 : i32, i32
  }
  func.func @transform_3(%arg0: i32) -> (i32, i32) {
    %c0_i32 = arith.constant 0 : i32
    %c0_i32_0 = arith.constant 0 : i32
    %c0_i32_1 = arith.constant 0 : i32
    return %c0_i32, %c0_i32_0 : i32, i32
  }
  func.func @transform_4(%arg0: i32) -> (i32, i32) {
    %c0_i32 = arith.constant 0 : i32
    %c0_i32_0 = arith.constant 0 : i32
    %c0_i32_1 = arith.constant 0 : i32
    return %c0_i32, %c0_i32_0 : i32, i32
  }
  func.func @transform_5(%arg0: i32) -> (i32, i32) {
    %c0_i32 = arith.constant 0 : i32
    %c0_i32_0 = arith.constant 0 : i32
    %c0_i32_1 = arith.constant 0 : i32
    return %c0_i32, %c0_i32_0 : i32, i32
  }
  func.func @transform_6(%arg0: i32) -> (i32, i32) {
    %c0_i32 = arith.constant 0 : i32
    %c0_i32_0 = arith.constant 0 : i32
    %c0_i32_1 = arith.constant 0 : i32
    return %c0_i32, %c0_i32_0 : i32, i32
  }
  func.func @transform_7(%arg0: i32) -> (i32, i32) {
    %c0_i32 = arith.constant 0 : i32
    %c0_i32_0 = arith.constant 0 : i32
    return %arg0, %c0_i32 : i32, i32
  }
}

</mosaic_0001>

<llo_original>
// kernel: dagma_mlp_forward.1
$region0: #{dagma_mlp_forward.1}
  #allocation0 [shape = 'u32[]', space=smem, size = 0x4, offset = 0x4, fixed_abs, tag = 'smem constant byte address 0x4 - core index']
  #allocation1 [shape = 'u32[72,128]{1,0:T(1,128)}', space=vmem, size = 0x9000, scoped, tag = 'internal scratch']
  %s0 = inlined_call_operand.vmem [shape: f32[100,16], index: 0, kind: input, shape index: {}]
  %s1 = inlined_call_operand.vmem [shape: f32[16,128], index: 1, kind: input, shape index: {}]
  %s2 = inlined_call_operand.vmem [shape: f32[1,128], index: 2, kind: input, shape index: {}]
  %s3 = inlined_call_operand.vmem [shape: f32[128,96], index: 3, kind: input, shape index: {}]
  %s4 = inlined_call_operand.vmem [shape: f32[1,96], index: 4, kind: input, shape index: {}]
  %s5 = inlined_call_operand.vmem [shape: f32[96,16], index: 5, kind: input, shape index: {}]
  %s6 = inlined_call_operand.vmem [shape: f32[1,16], index: 6, kind: input, shape index: {}]
  %s7 = inlined_call_operand.vmem [shape: f32[100,16], index: 7, kind: output, shape index: {}]
  %s8 = sld [smem:[#allocation0]]
  $region109: #{dagma_mlp_forward.1} parent=0
    _
  %s10 = ssub.s32 1, %s8
  %s11 = scalar_select 0, %s10, %s8
  $region1: #{dagma_mlp_forward.1} parent=0
    #allocation2 [shape = 'u8[16384]{0}', space=vmem, size = 0x4000, scoped, tag = 'output window, operand 0']
    loop: start=0, step=1, limit=9
    $region2: #{dagma_mlp_forward.1} parent=1 // loop_pre_header
      _
    $region3: #{dagma_mlp_forward.1} parent=1 // loop_header
      %s13 = sphi 0, %s17
      %p14 = scmp.ge.s32.totalorder %s13, 9
      %s23 = sphi 0, %s25
      %s26 = sphi 0, %s23
      %s27 = sphi 0, %s26
      %s43 = sphi 0, %s27
      %s47 = sphi 0, %s47
      %s49 = sphi 0, %s47
      %s50 = sphi 0, %s49
      %s64 = sphi 0, %s50
      %s68 = sphi 0, %s68
      %s70 = sphi 0, %s68
      %s71 = sphi 0, %s70
      %s85 = sphi 0, %s71
      %s89 = sphi 0, %s89
      %s91 = sphi 0, %s89
      %s92 = sphi 0, %s91
      %s106 = sphi 0, %s92
      %s110 = sphi 0, %s110
      %s112 = sphi 0, %s110
      %s113 = sphi 0, %s112
      %s127 = sphi 0, %s113
      %s131 = sphi 0, %s131
      %s133 = sphi 0, %s131
      %s134 = sphi 0, %s133
      %s148 = sphi 0, %s134
      %s152 = sphi 0, %s152
      %s154 = sphi 0, %s152
      %s155 = sphi 0, %s154
      %s169 = sphi 0, %s155
      %s175 = sphi 0, %s177
      %s178 = sphi 0, %s175
      %s179 = sphi 0, %s178
      %s195 = sphi 0, %s179
    $region4: #{dagma_mlp_forward.1} parent=1 // loop_header_branch
      %16 = sbr.rel (%p14) target = $region8
    $region5: #{dagma_mlp_forward.1} parent=1 // loop_body
      %s18 = ssub.s32 %s13, 1
      %s19 = ssub.s32 %s13, 2
      %s20 = sadd.s32 %s13, 1
      %s21 = ssub.s32 %s13, %s20
      %p22 = scmp.eq.s32.totalorder %s21, 0
      %s24 = sadd.s32 %s23, 1
      %s25 = scalar_select %p22, %s23, %s24
      %p28 = pneg %p22
      %p29 = scmp.eq.s32.totalorder %s13, 6
      %p30 = por %p28, %p29
      %p31 = scmp.ne.s32.totalorder %s23, %s26
      %p32 = scmp.eq.s32.totalorder %s13, 0
      %p33 = por %p31, %p32
      %p34 = scmp.ne.s32.totalorder %s23, %s26
      %p35 = scmp.eq.s32.totalorder %s18, 6
      %p36 = por %p34, %p35
      %p37 = scmp.ne.s32.totalorder %s26, %s27
      %p38 = scmp.eq.s32.totalorder %s18, 0
      %p39 = por %p37, %p38
      %p40 = scmp.ne.s32.totalorder %s26, %s27
      %p41 = scmp.eq.s32.totalorder %s19, 6
      %p42 = por %p40, %p41
      %p44 = scmp.ne.s32.totalorder %s27, %s43
      %p45 = scmp.eq.s32.totalorder %s19, 0
      %p46 = por %p44, %p45
      %s48 = sadd.s32 %s47, 1
      %p51 = scmp.eq.s32.totalorder %s13, 6
      %p52 = scmp.ne.s32.totalorder %s47, %s49
      %p53 = scmp.eq.s32.totalorder %s13, 0
      %p54 = por %p52, %p53
      %p55 = scmp.ne.s32.totalorder %s47, %s49
      %p56 = scmp.eq.s32.totalorder %s18, 6
      %p57 = por %p55, %p56
      %p58 = scmp.ne.s32.totalorder %s49, %s50
      %p59 = scmp.eq.s32.totalorder %s18, 0
      %p60 = por %p58, %p59
      %p61 = scmp.ne.s32.totalorder %s49, %s50
      %p62 = scmp.eq.s32.totalorder %s19, 6
      %p63 = por %p61, %p62
      %p65 = scmp.ne.s32.totalorder %s50, %s64
      %p66 = scmp.eq.s32.totalorder %s19, 0
      %p67 = por %p65, %p66
      %s69 = sadd.s32 %s68, 1
      %p72 = scmp.eq.s32.totalorder %s13, 6
      %p73 = scmp.ne.s32.totalorder %s68, %s70
      %p74 = scmp.eq.s32.totalorder %s13, 0
      %p75 = por %p73, %p74
      %p76 = scmp.ne.s32.totalorder %s68, %s70
      %p77 = scmp.eq.s32.totalorder %s18, 6
      %p78 = por %p76, %p77
      %p79 = scmp.ne.s32.totalorder %s70, %s71
      %p80 = scmp.eq.s32.totalorder %s18, 0
      %p81 = por %p79, %p80
      %p82 = scmp.ne.s32.totalorder %s70, %s71
      %p83 = scmp.eq.s32.totalorder %s19, 6
      %p84 = por %p82, %p83
      %p86 = scmp.ne.s32.totalorder %s71, %s85
      %p87 = scmp.eq.s32.totalorder %s19, 0
      %p88 = por %p86, %p87
      %s90 = sadd.s32 %s89, 1
      %p93 = scmp.eq.s32.totalorder %s13, 6
      %p94 = scmp.ne.s32.totalorder %s89, %s91
      %p95 = scmp.eq.s32.totalorder %s13, 0
      %p96 = por %p94, %p95
      %p97 = scmp.ne.s32.totalorder %s89, %s91
      %p98 = scmp.eq.s32.totalorder %s18, 6
      %p99 = por %p97, %p98
      %p100 = scmp.ne.s32.totalorder %s91, %s92
      %p101 = scmp.eq.s32.totalorder %s18, 0
      %p102 = por %p100, %p101
      %p103 = scmp.ne.s32.totalorder %s91, %s92
      %p104 = scmp.eq.s32.totalorder %s19, 6
      %p105 = por %p103, %p104
      %p107 = scmp.ne.s32.totalorder %s92, %s106
      %p108 = scmp.eq.s32.totalorder %s19, 0
      %p109 = por %p107, %p108
      %s111 = sadd.s32 %s110, 1
      %p114 = scmp.eq.s32.totalorder %s13, 6
      %p115 = scmp.ne.s32.totalorder %s110, %s112
      %p116 = scmp.eq.s32.totalorder %s13, 0
      %p117 = por %p115, %p116
      %p118 = scmp.ne.s32.totalorder %s110, %s112
      %p119 = scmp.eq.s32.totalorder %s18, 6
      %p120 = por %p118, %p119
      %p121 = scmp.ne.s32.totalorder %s112, %s113
      %p122 = scmp.eq.s32.totalorder %s18, 0
      %p123 = por %p121, %p122
      %p124 = scmp.ne.s32.totalorder %s112, %s113
      %p125 = scmp.eq.s32.totalorder %s19, 6
      %p126 = por %p124, %p125
      %p128 = scmp.ne.s32.totalorder %s113, %s127
      %p129 = scmp.eq.s32.totalorder %s19, 0
      %p130 = por %p128, %p129
      %s132 = sadd.s32 %s131, 1
      %p135 = scmp.eq.s32.totalorder %s13, 6
      %p136 = scmp.ne.s32.totalorder %s131, %s133
      %p137 = scmp.eq.s32.totalorder %s13, 0
      %p138 = por %p136, %p137
      %p139 = scmp.ne.s32.totalorder %s131, %s133
      %p140 = scmp.eq.s32.totalorder %s18, 6
      %p141 = por %p139, %p140
      %p142 = scmp.ne.s32.totalorder %s133, %s134
      %p143 = scmp.eq.s32.totalorder %s18, 0
      %p144 = por %p142, %p143
      %p145 = scmp.ne.s32.totalorder %s133, %s134
      %p146 = scmp.eq.s32.totalorder %s19, 6
      %p147 = por %p145, %p146
      %p149 = scmp.ne.s32.totalorder %s134, %s148
      %p150 = scmp.eq.s32.totalorder %s19, 0
      %p151 = por %p149, %p150
      %s153 = sadd.s32 %s152, 1
      %p156 = scmp.eq.s32.totalorder %s13, 6
      %p157 = scmp.ne.s32.totalorder %s152, %s154
      %p158 = scmp.eq.s32.totalorder %s13, 0
      %p159 = por %p157, %p158
      %p160 = scmp.ne.s32.totalorder %s152, %s154
      %p161 = scmp.eq.s32.totalorder %s18, 6
      %p162 = por %p160, %p161
      %p163 = scmp.ne.s32.totalorder %s154, %s155
      %p164 = scmp.eq.s32.totalorder %s18, 0
      %p165 = por %p163, %p164
      %p166 = scmp.ne.s32.totalorder %s154, %s155
      %p167 = scmp.eq.s32.totalorder %s19, 6
      %p168 = por %p166, %p167
      %p170 = scmp.ne.s32.totalorder %s155, %s169
      %p171 = scmp.eq.s32.totalorder %s19, 0
      %p172 = por %p170, %p171
      %s173 = ssub.s32 %s13, %s20
      %p174 = scmp.eq.s32.totalorder %s173, 0
      %s176 = sadd.s32 %s175, 1
      %s177 = scalar_select %p174, %s175, %s176
      %p180 = pneg %p174
      %p181 = scmp.eq.s32.totalorder %s13, 6
      %p182 = por %p180, %p181
      %p183 = scmp.ne.s32.totalorder %s175, %s178
      %p184 = scmp.eq.s32.totalorder %s13, 0
      %p185 = por %p183, %p184
      %p186 = scmp.ne.s32.totalorder %s175, %s178
      %p187 = scmp.eq.s32.totalorder %s18, 6
      %p188 = por %p186, %p187
      %p189 = scmp.ne.s32.totalorder %s178, %s179
      %p190 = scmp.eq.s32.totalorder %s18, 0
      %p191 = por %p189, %p190
      %p192 = scmp.ne.s32.totalorder %s178, %s179
      %p193 = scmp.eq.s32.totalorder %s19, 6
      %p194 = por %p192, %p193
      %p196 = scmp.ne.s32.totalorder %s179, %s195
      %p197 = scmp.eq.s32.totalorder %s19, 0
      %p198 = por %p196, %p197
      %p199 = scmp.le.s32.totalorder 1, %s13
      %p200 = scmp.lt.s32.totalorder %s13, 8
      %p201 = pnand %p199, %p200
      %p202 = pneg %p201
      // Predicated region
      $region9: #{dagma_mlp_forward.1} parent=5 // pred_check
        _
      $region10: #{dagma_mlp_forward.1} parent=5 // pred_check_branch
        %204 = sbr.rel (%p201) target = $region12
      $region11: #{dagma_mlp_forward.1} parent=5 // pred_region
        %s205 = ssub.s32 %s13, 1
        // Predicated region
        $region13: #{dagma_mlp_forward.1} parent=11 // pred_check
          %p206 = pneg %p60
        $region14: #{dagma_mlp_forward.1} parent=11 // pred_check_branch
          %208 = sbr.rel (%p206) target = $region16
        $region15: #{dagma_mlp_forward.1} parent=11 // pred_region
          _
        $region16: #{dagma_mlp_forward.1} parent=11 // pred_fallthru
          _
        // Predicated region
        $region17: #{dagma_mlp_forward.1} parent=11 // pred_check
          %p209 = pneg %p81
        $region18: #{dagma_mlp_forward.1} parent=11 // pred_check_branch
          %211 = sbr.rel (%p209) target = $region20
        $region19: #{dagma_mlp_forward.1} parent=11 // pred_region
          _
        $region20: #{dagma_mlp_forward.1} parent=11 // pred_fallthru
          _
        // Predicated region
        $region21: #{dagma_mlp_forward.1} parent=11 // pred_check
          %p212 = pneg %p102
        $region22: #{dagma_mlp_forward.1} parent=11 // pred_check_branch
          %214 = sbr.rel (%p212) target = $region24
        $region23: #{dagma_mlp_forward.1} parent=11 // pred_region
          _
        $region24: #{dagma_mlp_forward.1} parent=11 // pred_fallthru
          _
        // Predicated region
        $region25: #{dagma_mlp_forward.1} parent=11 // pred_check
          %p215 = pneg %p123
        $region26: #{dagma_mlp_forward.1} parent=11 // pred_check_branch
          %217 = sbr.rel (%p215) target = $region28
        $region27: #{dagma_mlp_forward.1} parent=11 // pred_region
          _
        $region28: #{dagma_mlp_forward.1} parent=11 // pred_fallthru
          _
        // Predicated region
        $region29: #{dagma_mlp_forward.1} parent=11 // pred_check
          %p218 = pneg %p144
        $region30: #{dagma_mlp_forward.1} parent=11 // pred_check_branch
          %220 = sbr.rel (%p218) target = $region32
        $region31: #{dagma_mlp_forward.1} parent=11 // pred_region
          _
        $region32: #{dagma_mlp_forward.1} parent=11 // pred_fallthru
          _
        // Predicated region
        $region33: #{dagma_mlp_forward.1} parent=11 // pred_check
          %p221 = pneg %p165
        $region34: #{dagma_mlp_forward.1} parent=11 // pred_check_branch
          %223 = sbr.rel (%p221) target = $region36
        $region35: #{dagma_mlp_forward.1} parent=11 // pred_region
          _
        $region36: #{dagma_mlp_forward.1} parent=11 // pred_fallthru
          _
      $region12: #{dagma_mlp_forward.1} parent=5 // pred_fallthru
        _
      %p224 = scmp.lt.s32.totalorder %s13, 7
      // Predicated region
      $region37: #{dagma_mlp_forward.1} parent=5 // pred_check
        %p225 = pneg %p224
      $region38: #{dagma_mlp_forward.1} parent=5 // pred_check_branch
        %227 = sbr.rel (%p225) target = $region40
      $region39: #{dagma_mlp_forward.1} parent=5 // pred_region
        // Predicated region
        $region41: #{dagma_mlp_forward.1} parent=39 // pred_check
          %p228 = pneg %p33
        $region42: #{dagma_mlp_forward.1} parent=39 // pred_check_branch
          %230 = sbr.rel (%p228) target = $region44
        $region43: #{dagma_mlp_forward.1} parent=39 // pred_region
          %s231 = smul.u32 2, %s13
          %s232 = ssub.s32 13, %s231
          %p233 = scmp.lt.s32.totalorder %s232, 2
          %s234 = scalar_select %p233, %s232, 2
          %s235 = smul.u32 8, %s234
          %p236 = scmp.lt.s32.totalorder %s231, 12
          %s237 = scalar_select %p236, %s231, 12
          %s238 = smul.addr %s237, 8
          %s239 = scalar_lea.vmem %s0, %s238
          %s240 = smul.u32 2, %s13
          %s241 = ssub.s32 13, %s240
          %p242 = scmp.lt.s32.totalorder %s241, 2
          %s243 = scalar_select %p242, %s241, 2
          %s244 = smul.u32 8, %s243
        $region44: #{dagma_mlp_forward.1} parent=39 // pred_fallthru
          _
      $region40: #{dagma_mlp_forward.1} parent=5 // pred_fallthru
        _
      %p245 = scmp.le.s32.totalorder 1, %s13
      %p246 = scmp.lt.s32.totalorder %s13, 8
      %p247 = pnand %p245, %p246
      %p248 = pneg %p247
      // Predicated region
      $region45: #{dagma_mlp_forward.1} parent=5 // pred_check
        _
      $region46: #{dagma_mlp_forward.1} parent=5 // pred_check_branch
        %250 = sbr.rel (%p247) target = $region48
      $region47: #{dagma_mlp_forward.1} parent=5 // pred_region
        %s251 = ssub.s32 %s13, 1
        %s252 = smul.u32 2, %s18
        %s253 = ssub.s32 13, %s252
        %p254 = scmp.lt.s32.totalorder %s253, 2
        %s255 = scalar_select %p254, %s253, 2
        %s256 = smul.u32 8, %s255
        %p257 = scmp.lt.s32.totalorder %s252, 12
        %s258 = scalar_select %p257, %s252, 12
        %s259 = smul.addr %s258, 8
        %s260 = scalar_lea.vmem %s0, %s259
        %p261 = pneg %p39
        %p262 = pneg %p36
        %p263 = pneg %p60
        %p264 = pneg %p57
        %p265 = pneg %p81
        %p266 = pneg %p78
        %p267 = pneg %p102
        %p268 = pneg %p99
        %p269 = pneg %p123
        %p270 = pneg %p120
        %p271 = pneg %p144
        %p272 = pneg %p141
        %p273 = pneg %p165
        %p274 = pneg %p162
        %p275 = pneg %p191
        %p276 = pneg %p188
        %s277 = sand.u32 %s178, 1
        %s278 = sand.u32 %s178, 1
        %s279 = smul.addr %s278, 16
        %s280 = scalar_lea.vmem [#allocation2], %s279
        %s281 = smul.u32 2, %s18
        %s282 = ssub.s32 13, %s281
        %p283 = scmp.lt.s32.totalorder %s282, 2
        %s284 = scalar_select %p283, %s282, 2
        %s285 = smul.u32 8, %s284
        %p286 = scmp.lt.s32.totalorder %s281, 12
        %s287 = scalar_select %p286, %s281, 12
        %s288 = smul.addr %s287, 8
        %s289 = scalar_lea.vmem %s0, %s288
        %s290 = smul.u32 2, %s18
        %s291 = ssub.s32 13, %s290
        %p292 = scmp.lt.s32.totalorder %s291, 2
        %s293 = scalar_select %p292, %s291, 2
        %s294 = smul.u32 8, %s293
        %s295 = smul.u32 2, %s18
        %s296 = ssub.s32 13, %s295
        %p297 = scmp.lt.s32.totalorder %s296, 2
        %s298 = scalar_select %p297, %s296, 2
        %s299 = smul.u32 8, %s298
        %v300 = vld [vmem:[%s289] sm:$0xff]
        %v301 = vld [vmem:[%s289 + $0x8] sm:$0xff]
        %v302 = vld [vmem:[%s1] sm:$0xff]
        %v303 = vld [vmem:[%s1 + $0x8] sm:$0xff]
        %v304 = vld [vmem:[%s2] sm:$0x1]
        %v306 = vperm.slane %v304, 0
        %vm308 = vcmask 130048
        %v310 = vsel %vm308, %v300, 0
        %v313 = vsel %vm308, %v301, 0
        %315 = vmatpush.msra.mxu0 0.0
        %316 = vmatpush.msra.mxu0 0.0
        %317 = vmatpush.msra.mxu0 0.0
        %318 = vmatpush.msra.mxu0 0.0
        %319 = vmatpush.msra.mxu0 0.0
        %320 = vmatpush.msra.mxu0 0.0
        %321 = vmatpush.msra.mxu0 0.0
        %322 = vmatpush.msra.mxu0 0.0
        %323 = vmatpush.msra.mxu0 0.0
        %324 = vmatpush.msra.mxu0 0.0
        %325 = vmatpush.msra.mxu0 0.0
        %326 = vmatpush.msra.mxu0 0.0
        %327 = vmatpush.msra.mxu0 0.0
        %328 = vmatpush.msra.mxu0 0.0
        %329 = vmatpush.msra.mxu0 %v303
        %330 = vmatpush.msra.mxu0 %v302
        %331 = vmatmul.f32.gmra.mxu0 %v310
        %v332 = vpop.f32.mrf.mxu0
        %v333 = vadd.f32 %v306, %v332
        %334 = vmatmul.f32.gmra.mxu0 %v313
        %v335 = vpop.f32.mrf.mxu0
        %v336 = vadd.f32 %v306, %v335
        %337 = vdwg.mxu0
        %v338 = vxor.u32 %v333, 2147483648
        %v339 = vxor.u32 %v336, 2147483648
        %v340 = vmul.f32 %v338, 1.442695
        %v341 = vpow.pop %v340
        %v342 = vmul.f32 %v339, 1.442695
        %v343 = vpow.pop %v342
        %v344 = vadd.f32 %v341, 1.0
        %v345 = vadd.f32 %v343, 1.0
        %v346 = vrcp.pop %v344
        %v347 = vmul.f32 %v344, %v346
        %v348 = vsub.f32 1.0, %v347
        %v349 = vmul.f32 %v346, %v348
        %v350 = vadd.f32 %v346, %v349
        %vm351 = vweird.f32 %v344
        %vm352 = vweird.f32 %v346
        %vm353 = vmor %vm351, %vm352
        %v354 = vsel %vm353, %v346, %v350
        %v355 = vand.u32 2147483647, %v344
        %vm356 = vcmp.eq.f32.partialorder %v355, 8.507059e+37
        %v357 = vand.u32 %v344, 2147483648
        %v358 = vor.u32 1.1754944e-38, %v357
        %v359 = vsel %vm356, %v358, %v354
        %v360 = vmul.f32 1.0, %v359
        %v361 = vrcp.pop %v345
        %v362 = vmul.f32 %v345, %v361
        %v363 = vsub.f32 1.0, %v362
        %v364 = vmul.f32 %v361, %v363
        %v365 = vadd.f32 %v361, %v364
        %vm366 = vweird.f32 %v345
        %vm367 = vweird.f32 %v361
        %vm368 = vmor %vm366, %vm367
        %v369 = vsel %vm368, %v361, %v365
        %v370 = vand.u32 2147483647, %v345
        %vm371 = vcmp.eq.f32.partialorder %v370, 8.507059e+37
        %v372 = vand.u32 %v345, 2147483648
        %v373 = vor.u32 1.1754944e-38, %v372
        %v374 = vsel %vm371, %v373, %v369
        %v375 = vmul.f32 1.0, %v374
        %v376 = vld [vmem:[%s3] sm:$0xff]
        %v377 = vld [vmem:[%s3 + $0x8] sm:$0xff]
        %v378 = vld [vmem:[%s3 + $0x10] sm:$0xff]
        %v379 = vld [vmem:[%s3 + $0x18] sm:$0xff]
        %v380 = vld [vmem:[%s3 + $0x20] sm:$0xff]
        %v381 = vld [vmem:[%s3 + $0x28] sm:$0xff]
        %v382 = vld [vmem:[%s3 + $0x30] sm:$0xff]
        %v383 = vld [vmem:[%s3 + $0x38] sm:$0xff]
        %v384 = vld [vmem:[%s3 + $0x40] sm:$0xff]
        %v385 = vld [vmem:[%s3 + $0x48] sm:$0xff]
        %v386 = vld [vmem:[%s3 + $0x50] sm:$0xff]
        %v387 = vld [vmem:[%s3 + $0x58] sm:$0xff]
        %v388 = vld [vmem:[%s3 + $0x60] sm:$0xff]
        %v389 = vld [vmem:[%s3 + $0x68] sm:$0xff]
        %v390 = vld [vmem:[%s3 + $0x70] sm:$0xff]
        %v391 = vld [vmem:[%s3 + $0x78] sm:$0xff]
        %v392 = vld [vmem:[%s4] sm:$0x1]
        %v394 = vperm.slane %v392, 0
        %396 = vmatpush.msra.mxu0 %v391
        %397 = vmatpush.msra.mxu0 %v390
        %398 = vmatpush.msra.mxu0 %v389
        %399 = vmatpush.msra.mxu0 %v388
        %400 = vmatpush.msra.mxu0 %v387
        %401 = vmatpush.msra.mxu0 %v386
        %402 = vmatpush.msra.mxu0 %v385
        %403 = vmatpush.msra.mxu0 %v384
        %404 = vmatpush.msra.mxu0 %v383
        %405 = vmatpush.msra.mxu0 %v382
        %406 = vmatpush.msra.mxu0 %v381
        %407 = vmatpush.msra.mxu0 %v380
        %408 = vmatpush.msra.mxu0 %v379
        %409 = vmatpush.msra.mxu0 %v378
        %410 = vmatpush.msra.mxu0 %v377
        %411 = vmatpush.msra.mxu0 %v376
        %412 = vmatmul.f32.gmra.mxu0 %v360
        %v413 = vpop.f32.mrf.mxu0
        %v414 = vadd.f32 %v394, %v413
        %415 = vmatmul.f32.gmra.mxu0 %v375
        %v416 = vpop.f32.mrf.mxu0
        %v417 = vadd.f32 %v394, %v416
        %418 = vdwg.mxu0
        %v419 = vxor.u32 %v414, 2147483648
        %v420 = vxor.u32 %v417, 2147483648
        %v421 = vmul.f32 %v419, 1.442695
        %v422 = vpow.pop %v421
        %v423 = vmul.f32 %v420, 1.442695
        %v424 = vpow.pop %v423
        %v425 = vadd.f32 %v422, 1.0
        %v426 = vadd.f32 %v424, 1.0
        %v427 = vrcp.pop %v425
        %v428 = vmul.f32 %v425, %v427
        %v429 = vsub.f32 1.0, %v428
        %v430 = vmul.f32 %v427, %v429
        %v431 = vadd.f32 %v427, %v430
        %vm432 = vweird.f32 %v425
        %vm433 = vweird.f32 %v427
        %vm434 = vmor %vm432, %vm433
        %v435 = vsel %vm434, %v427, %v431
        %v436 = vand.u32 2147483647, %v425
        %vm437 = vcmp.eq.f32.partialorder %v436, 8.507059e+37
        %v438 = vand.u32 %v425, 2147483648
        %v439 = vor.u32 1.1754944e-38, %v438
        %v440 = vsel %vm437, %v439, %v435
        %v441 = vmul.f32 1.0, %v440
        %v442 = vrcp.pop %v426
        %v443 = vmul.f32 %v426, %v442
        %v444 = vsub.f32 1.0, %v443
        %v445 = vmul.f32 %v442, %v444
        %v446 = vadd.f32 %v442, %v445
        %vm447 = vweird.f32 %v426
        %vm448 = vweird.f32 %v442
        %vm449 = vmor %vm447, %vm448
        %v450 = vsel %vm449, %v442, %v446
        %v451 = vand.u32 2147483647, %v426
        %vm452 = vcmp.eq.f32.partialorder %v451, 8.507059e+37
        %v453 = vand.u32 %v426, 2147483648
        %v454 = vor.u32 1.1754944e-38, %v453
        %v455 = vsel %vm452, %v454, %v450
        %v456 = vmul.f32 1.0, %v455
        %v457 = vld [vmem:[%s5] sm:$0xff]
        %v458 = vld [vmem:[%s5 + $0x8] sm:$0xff]
        %v459 = vld [vmem:[%s5 + $0x10] sm:$0xff]
        %v460 = vld [vmem:[%s5 + $0x18] sm:$0xff]
        %v461 = vld [vmem:[%s5 + $0x20] sm:$0xff]
        %v462 = vld [vmem:[%s5 + $0x28] sm:$0xff]
        %v463 = vld [vmem:[%s5 + $0x30] sm:$0xff]
        %v464 = vld [vmem:[%s5 + $0x38] sm:$0xff]
        %v465 = vld [vmem:[%s5 + $0x40] sm:$0xff]
        %v466 = vld [vmem:[%s5 + $0x48] sm:$0xff]
        %v467 = vld [vmem:[%s5 + $0x50] sm:$0xff]
        %v468 = vld [vmem:[%s5 + $0x58] sm:$0xff]
        %v469 = vld [vmem:[%s6] sm:$0x1]
        %v471 = vperm.slane %v469, 0
        %vm473 = vcmask 785408
        %v475 = vsel %vm473, %v441, 0
        %v478 = vsel %vm473, %v456, 0
        %480 = vmatpush.msra.mxu0 0.0
        %481 = vmatpush.msra.mxu0 0.0
        %482 = vmatpush.msra.mxu0 0.0
        %483 = vmatpush.msra.mxu0 0.0
        %484 = vmatpush.msra.mxu0 %v468
        %485 = vmatpush.msra.mxu0 %v467
        %486 = vmatpush.msra.mxu0 %v466
        %487 = vmatpush.msra.mxu0 %v465
        %488 = vmatpush.msra.mxu0 %v464
        %489 = vmatpush.msra.mxu0 %v463
        %490 = vmatpush.msra.mxu0 %v462
        %491 = vmatpush.msra.mxu0 %v461
        %492 = vmatpush.msra.mxu0 %v460
        %493 = vmatpush.msra.mxu0 %v459
        %494 = vmatpush.msra.mxu0 %v458
        %495 = vmatpush.msra.mxu0 %v457
        %496 = vmatmul.f32.gmra.mxu0 %v475
        %v497 = vpop.f32.mrf.mxu0
        %v498 = vadd.f32 %v471, %v497
        %499 = vmatmul.f32.gmra.mxu0 %v478
        %v500 = vpop.f32.mrf.mxu0
        %v501 = vadd.f32 %v471, %v500
        %502 = vdwg.mxu0
        %503 = vst.msk [vmem:[%s280] sm:$0xff] %vm308, %v498
        %504 = vst.msk [vmem:[%s280 + $0x8] sm:$0xff] %vm308, %v501
        %s505 = sand.u32 %s178, 1
        %s506 = sand.u32 %s178, 1
        %s507 = smul.addr %s506, 16
        %s508 = scalar_lea.vmem [#allocation2], %s507
        // Predicated region
        $region49: #{dagma_mlp_forward.1} parent=47 // pred_check
          %p509 = pneg %p188
        $region50: #{dagma_mlp_forward.1} parent=47 // pred_check_branch
          %511 = sbr.rel (%p509) target = $region52
        $region51: #{dagma_mlp_forward.1} parent=47 // pred_region
          %s512 = smul.u32 2, %s18
          %s513 = ssub.s32 13, %s512
          %p514 = scmp.lt.s32.totalorder %s513, 2
          %s515 = scalar_select %p514, %s513, 2
          %s516 = smul.u32 8, %s515
          %p517 = scmp.ne.s32.totalorder 0, %s516
          %s518 = smul.addr %s512, 8
          %s519 = scalar_lea.vmem %s7, %s518
          // Predicated region
          $region53: #{dagma_mlp_forward.1} parent=51 // pred_check
            %p520 = pneg %p517
          $region54: #{dagma_mlp_forward.1} parent=51 // pred_check_branch
            %522 = sbr.rel (%p520) target = $region56
          $region55: #{dagma_mlp_forward.1} parent=51 // pred_region
            // Predicated region
            $region57: #{dagma_mlp_forward.1} parent=55 // pred_check
              _
            $region58: #{dagma_mlp_forward.1} parent=55 // pred_check_branch
              %524 = sbr.rel (0) target = $region60
            $region59: #{dagma_mlp_forward.1} parent=55 // pred_region
              // Predicated region
              $region79: #{dagma_mlp_forward.1} parent=59 // pred_check
                _
              $region80: #{dagma_mlp_forward.1} parent=59 // pred_check_branch
                %576 = sbr.rel (0) target = $region82
              $region81: #{dagma_mlp_forward.1} parent=59 // pred_region
                %s577 = sshrl.u32 %s515, 1
                // While loop
                $region83: #{dagma_mlp_forward.1} parent=81 // loop_pre_header
                  _
                $region84: #{dagma_mlp_forward.1} parent=81 // loop_header
                  %s579 = sphi 0, %s581
                  %p580 = scmp.ge.s32.totalorder %s579, %s577
                  %s584 = sphi 0, %s593
                  %s585 = sphi %s508, %s596
                  %s586 = sphi %s519, %s597
                $region85: #{dagma_mlp_forward.1} parent=81 // loop_header_branch
                  %583 = sbr.rel (%p580) target = $region89
                $region86: #{dagma_mlp_forward.1} parent=81 // loop_body
                  %v587 = vld [vmem:[%s585] sm:$0xff]
                  %588 = vst [vmem:[%s586] sm:$0xff] %v587
                  %v589 = vld [vmem:[%s585 + $0x8] sm:$0xff]
                  %590 = vst [vmem:[%s586 + $0x8] sm:$0xff] %v589
                  %s591 = sadd.s32 1, %s584
                  %p592 = scmp.ge.s32.totalorder %s591, %s577
                  %s593 = scalar_select %p592, 0, %s591
                  %s594 = smul.u32 %s593, 16
                  %s595 = smul.u32 %s593, 16
                  %s596 = scalar_lea.vmem %s508, %s594 [#allocation2]
                  %s597 = scalar_lea.vmem %s519, %s595
                $region87: #{dagma_mlp_forward.1} parent=81 // loop_footer
                  %s581 = sadd.s32 %s579, 1
                $region88: #{dagma_mlp_forward.1} parent=81 // loop_footer_branch
                  %578 = sbr.rel target = $region84
                $region89: #{dagma_mlp_forward.1} parent=81 // loop_exit
                  _
                %s598 = sshrl.u32 %s515, 1
                %s599 = sand.u32 %s515, 1
                %s600 = smul.u32 %s598, 2
                %s601 = smul.u32 8, %s600
                %s602 = scalar_lea.vmem %s508, %s601 [#allocation2]
                %s603 = smul.u32 8, %s600
                %s604 = scalar_lea.vmem %s519, %s603
                // While loop
                $region90: #{dagma_mlp_forward.1} parent=81 // loop_pre_header
                  _
                $region91: #{dagma_mlp_forward.1} parent=81 // loop_header
                  %s606 = sphi 0, %s608
                  %p607 = scmp.ge.s32.totalorder %s606, %s599
                  %s611 = sphi 0, %s618
                  %s612 = sphi %s602, %s621
                  %s613 = sphi %s604, %s622
                $region92: #{dagma_mlp_forward.1} parent=81 // loop_header_branch
                  %610 = sbr.rel (%p607) target = $region96
                $region93: #{dagma_mlp_forward.1} parent=81 // loop_body
                  %v614 = vld [vmem:[%s612] sm:$0xff]
                  %615 = vst [vmem:[%s613] sm:$0xff] %v614
                  %s616 = sadd.s32 1, %s611
                  %p617 = scmp.ge.s32.totalorder %s616, %s599
                  %s618 = scalar_select %p617, 0, %s616
                  %s619 = smul.u32 %s618, 8
                  %s620 = smul.u32 %s618, 8
                  %s621 = scalar_lea.vmem %s602, %s619 [#allocation2]
                  %s622 = scalar_lea.vmem %s604, %s620
                $region94: #{dagma_mlp_forward.1} parent=81 // loop_footer
                  %s608 = sadd.s32 %s606, 1
                $region95: #{dagma_mlp_forward.1} parent=81 // loop_footer_branch
                  %605 = sbr.rel target = $region91
                $region96: #{dagma_mlp_forward.1} parent=81 // loop_exit
                  _
              $region82: #{dagma_mlp_forward.1} parent=59 // pred_fallthru
                _
              // Predicated region
              $region97: #{dagma_mlp_forward.1} parent=59 // pred_check
                _
              $region98: #{dagma_mlp_forward.1} parent=59 // pred_check_branch
                %624 = sbr.rel target = $region100
              $region99: #{dagma_mlp_forward.1} parent=59 // pred_region
                _
              $region100: #{dagma_mlp_forward.1} parent=59 // pred_fallthru
                _
            $region60: #{dagma_mlp_forward.1} parent=55 // pred_fallthru
              _
            // Predicated region
            $region61: #{dagma_mlp_forward.1} parent=55 // pred_check
              _
            $region62: #{dagma_mlp_forward.1} parent=55 // pred_check_branch
              %526 = sbr.rel target = $region64
            $region63: #{dagma_mlp_forward.1} parent=55 // pred_region
              %s528 = ssub.s32 256, 1
              %s529 = sshrl.u32 %s515, 1
              // While loop
              $region65: #{dagma_mlp_forward.1} parent=63 // loop_pre_header
                _
              $region66: #{dagma_mlp_forward.1} parent=63 // loop_header
                %s531 = sphi 0, %s533
                %p532 = scmp.ge.s32.totalorder %s531, %s529
                %s536 = sphi 0, %s545
                %s537 = sphi %s508, %s548
                %s538 = sphi %s519, %s549
              $region67: #{dagma_mlp_forward.1} parent=63 // loop_header_branch
                %535 = sbr.rel (%p532) target = $region71
              $region68: #{dagma_mlp_forward.1} parent=63 // loop_body
                %v539 = vld [vmem:[%s537] sm:%s528]
                %540 = vst [vmem:[%s538] sm:%s528] %v539
                %v541 = vld [vmem:[%s537 + $0x8] sm:%s528]
                %542 = vst [vmem:[%s538 + $0x8] sm:%s528] %v541
                %s543 = sadd.s32 1, %s536
                %p544 = scmp.ge.s32.totalorder %s543, %s529
                %s545 = scalar_select %p544, 0, %s543
                %s546 = smul.u32 %s545, 16
                %s547 = smul.u32 %s545, 16
                %s548 = scalar_lea.vmem %s508, %s546 [#allocation2]
                %s549 = scalar_lea.vmem %s519, %s547
              $region69: #{dagma_mlp_forward.1} parent=63 // loop_footer
                %s533 = sadd.s32 %s531, 1
              $region70: #{dagma_mlp_forward.1} parent=63 // loop_footer_branch
                %530 = sbr.rel target = $region66
              $region71: #{dagma_mlp_forward.1} parent=63 // loop_exit
                _
              %s550 = sshrl.u32 %s515, 1
              %s551 = sand.u32 %s515, 1
              %s552 = smul.u32 %s550, 2
              %s553 = smul.u32 8, %s552
              %s554 = scalar_lea.vmem %s508, %s553 [#allocation2]
              %s555 = smul.u32 8, %s552
              %s556 = scalar_lea.vmem %s519, %s555
              // While loop
              $region72: #{dagma_mlp_forward.1} parent=63 // loop_pre_header
                _
              $region73: #{dagma_mlp_forward.1} parent=63 // loop_header
                %s558 = sphi 0, %s560
                %p559 = scmp.ge.s32.totalorder %s558, %s551
                %s563 = sphi 0, %s570
                %s564 = sphi %s554, %s573
                %s565 = sphi %s556, %s574
              $region74: #{dagma_mlp_forward.1} parent=63 // loop_header_branch
                %562 = sbr.rel (%p559) target = $region78
              $region75: #{dagma_mlp_forward.1} parent=63 // loop_body
                %v566 = vld [vmem:[%s564] sm:%s528]
                %567 = vst [vmem:[%s565] sm:%s528] %v566
                %s568 = sadd.s32 1, %s563
                %p569 = scmp.ge.s32.totalorder %s568, %s551
                %s570 = scalar_select %p569, 0, %s568
                %s571 = smul.u32 %s570, 8
                %s572 = smul.u32 %s570, 8
                %s573 = scalar_lea.vmem %s554, %s571 [#allocation2]
                %s574 = scalar_lea.vmem %s556, %s572
              $region76: #{dagma_mlp_forward.1} parent=63 // loop_footer
                %s560 = sadd.s32 %s558, 1
              $region77: #{dagma_mlp_forward.1} parent=63 // loop_footer_branch
                %557 = sbr.rel target = $region73
              $region78: #{dagma_mlp_forward.1} parent=63 // loop_exit
                _
            $region64: #{dagma_mlp_forward.1} parent=55 // pred_fallthru
              _
          $region56: #{dagma_mlp_forward.1} parent=51 // pred_fallthru
            _
          %625 = vnop
        $region52: #{dagma_mlp_forward.1} parent=47 // pred_fallthru
          _
      $region48: #{dagma_mlp_forward.1} parent=5 // pred_fallthru
        _
      %p626 = scmp.le.s32.totalorder 2, %s13
      // Predicated region
      $region101: #{dagma_mlp_forward.1} parent=5 // pred_check
        %p627 = pneg %p626
      $region102: #{dagma_mlp_forward.1} parent=5 // pred_check_branch
        %629 = sbr.rel (%p627) target = $region104
      $region103: #{dagma_mlp_forward.1} parent=5 // pred_region
        %s630 = ssub.s32 %s13, 2
        // Predicated region
        $region105: #{dagma_mlp_forward.1} parent=103 // pred_check
          %p631 = pneg %p194
        $region106: #{dagma_mlp_forward.1} parent=103 // pred_check_branch
          %633 = sbr.rel (%p631) target = $region108
        $region107: #{dagma_mlp_forward.1} parent=103 // pred_region
          %s634 = sand.u32 %s179, 1
          %s635 = sand.u32 %s179, 1
          %s636 = smul.addr %s635, 16
          %s637 = scalar_lea.vmem [#allocation2], %s636
        $region108: #{dagma_mlp_forward.1} parent=103 // pred_fallthru
          _
      $region104: #{dagma_mlp_forward.1} parent=5 // pred_fallthru
        _
    $region6: #{dagma_mlp_forward.1} parent=1 // loop_footer
      %s17 = sadd.s32 1, %s13
    $region7: #{dagma_mlp_forward.1} parent=1 // loop_footer_branch
      %12 = sbr.rel target = $region3
    $region8: #{dagma_mlp_forward.1} parent=1 // loop_exit
      _

</llo_original>
